<compile_context>
chip_gen: v5e
topology: v5e:2x2
jax: 0.10.0
libtpu: 0.0.40
codegen_flags: <defaults>
</compile_context>

<pallas_src>
import jax
import jax.numpy as jnp
from jax.experimental import pallas as pl
from jax.experimental.pallas import tpu as pltpu

KERNEL_SIZE = 2
STRIDE = 2


# ----------------------------------------------------------------------------
# Kernel: flat NCHW view, no transposes.
# ----------------------------------------------------------------------------
def _maxpool_rows_kernel(x_ref, o_ref):
    # x_ref: (Rblk, W) block of the flat (N*C*H, W) view.
    # o_ref: (Rblk // 2, W // 2) block of the flat pooled output.
    ro, wo = o_ref.shape
    # H direction: strided pair maxima over adjacent sublane rows.
    top = x_ref[pl.ds(0, ro, stride=2), :]     # rows 0, 2, 4, ...
    bot = x_ref[pl.ds(1, ro, stride=2), :]     # rows 1, 3, 5, ...
    rows = jnp.maximum(top, bot)               # (ro, W)
    # W direction: pair adjacent lanes (minor-dim reshape) and reduce.
    o_ref[...] = jnp.max(rows.reshape(ro, wo, 2), axis=-1).astype(o_ref.dtype)


# ----------------------------------------------------------------------------
# Block-size selection.
# ----------------------------------------------------------------------------
def _pick_row_block(n_rows, row_bytes, itemsize, target_bytes=4 * 1024 * 1024):
    """Pick the flat-row block size.

    Blocks are multiples of the dtype's native sublane tile so the input
    block and the half-height output block stay aligned.  Returns
    (rblk, ragged) where `ragged` means the last grid step is a padded /
    masked edge block (safe: OOB inputs only feed OOB, masked outputs).
    """
    mult = 16 * max(1, 4 // itemsize)          # f32: 16, bf16: 32, int8: 64
    max_fit = max(mult, (target_bytes // max(1, row_bytes)) // mult * mult)
    if n_rows <= max_fit:
        return n_rows, False                   # single full-extent block
    divisors = [r for r in range(mult, max_fit + 1, mult) if n_rows % r == 0]
    if divisors:
        return max(divisors), False            # evenly dividing, aligned
    return max_fit, True                       # ragged (masked) edge block


def _maxpool2d_nchw(x):
    """2x2/stride-2 max pool on an even-spatial NCHW tensor, no transposes."""
    N, C, H, W = x.shape
    Ho, Wo = H // KERNEL_SIZE, W // KERNEL_SIZE
    R = N * C * H                      # flat input rows (H is even here)
    x2d = x.reshape(R, W)              # free, contiguous view

    itemsize = jnp.dtype(x.dtype).itemsize
    rblk, _ = _pick_row_block(R, W * itemsize, itemsize)
    grid = (pl.cdiv(R, rblk),)

    in_block_bytes = rblk * W * itemsize
    out_block_bytes = (rblk // 2) * Wo * itemsize
    # Double-buffered input + output blocks plus intermediates, with
    # headroom; capped so it is safe even on v7x's 64 MiB physical VMEM.
    vmem_limit = int(min(48 * 1024 * 1024,
                         max(32 * 1024 * 1024,
                             4 * (in_block_bytes + out_block_bytes))))

    out_flat = pl.pallas_call(
        _maxpool_rows_kernel,
        out_shape=jax.ShapeDtypeStruct((R // 2, Wo), x.dtype),
        grid=grid,
        in_specs=[pl.BlockSpec((rblk, W), lambda i: (i, 0))],
        out_specs=pl.BlockSpec((rblk // 2, Wo), lambda i: (i, 0)),
        compiler_params=pltpu.CompilerParams(
            dimension_semantics=("parallel",),
            vmem_limit_bytes=vmem_limit,
        ),
        cost_estimate=pl.CostEstimate(
            flops=3 * (R // 2) * Wo,                       # 3 maxes / output
            transcendentals=0,
            bytes_accessed=(R * W + (R // 2) * Wo) * itemsize,
        ),
    )(x2d)

    return out_flat.reshape(N, C, Ho, Wo)


_maxpool2d_nchw_jit = jax.jit(_maxpool2d_nchw)


# ----------------------------------------------------------------------------
# Public API: matches nn.MaxPool2d(kernel_size=2, stride=2) on NCHW input.
# ----------------------------------------------------------------------------
def maxpool2d(x_nchw: jax.Array) -> jax.Array:
    N, C, H, W = x_nchw.shape
    Ho, Wo = H // STRIDE, W // STRIDE
    assert Ho >= 1 and Wo >= 1, "input smaller than the pooling window"
    # PyTorch floor behaviour: trailing odd row/col is dropped.  Crop only
    # when needed so the common even-sized case stays copy-free.
    if H % 2:
        x_nchw = x_nchw[:, :, : 2 * Ho, :]
    if W % 2:
        x_nchw = x_nchw[:, :, :, : 2 * Wo]
    return _maxpool2d_nchw_jit(x_nchw)


if __name__ == "__main__":
    key = jax.random.PRNGKey(0)
    k0, k1 = jax.random.split(key)

    # Small NCHW input consistent with the module's forward.
    x = jax.random.normal(k0, (2, 4, 16, 16), dtype=jnp.float32)
    out = jax.block_until_ready(maxpool2d(x))
    N, C, H, W = x.shape
    ref = jnp.max(x.reshape(N, C, H // 2, 2, W // 2, 2), axis=(3, 5))
    assert out.shape == (2, 4, 8, 8)
    assert out.dtype == x.dtype
    assert jnp.allclose(out, ref), "Pallas maxpool mismatch vs reference"

    # Odd spatial dims exercise the PyTorch floor (crop) path.
    x2 = jax.random.normal(k1, (2, 3, 17, 33), dtype=jnp.float32)
    out2 = jax.block_until_ready(maxpool2d(x2))
    xc = x2[:, :, :16, :32]
    ref2 = jnp.max(xc.reshape(2, 3, 8, 2, 16, 2), axis=(3, 5))
    assert out2.shape == (2, 3, 8, 16)
    assert jnp.allclose(out2, ref2), "Pallas maxpool mismatch (odd dims)"

    print("KERNEL_OK")
</pallas_src>

<mosaic_0001>
module attributes {stable_mosaic.version = 11 : i64} {
  func.func @_maxpool_rows_kernel(%arg0: i32, %arg1: memref<128x16xf32, #tpu.memory_space<vmem>>, %arg2: memref<64x8xf32, #tpu.memory_space<vmem>>) attributes {dimension_semantics = [#tpu.dimension_semantics<parallel>], iteration_bounds = array<i64: 1>, scalar_prefetch = 0 : i64, scratch_operands = 0 : i64, tpu.core_type = #tpu.core_type<tc>, window_params = [{transform_indices = @transform_0, window_bounds = array<i64: 128, 16>}, {transform_indices = @transform_1, window_bounds = array<i64: 64, 8>}]} {
    %c0 = arith.constant 0 : index
    %c0_0 = arith.constant 0 : index
    %0 = tpu.strided_load %arg1[%c0, %c0_0] {strides = array<i32: 2, 1>} : memref<128x16xf32, #tpu.memory_space<vmem>>, vector<64x16xf32>
    %c1 = arith.constant 1 : index
    %c0_1 = arith.constant 0 : index
    %1 = tpu.strided_load %arg1[%c1, %c0_1] {strides = array<i32: 2, 1>} : memref<128x16xf32, #tpu.memory_space<vmem>>, vector<64x16xf32>
    %2 = arith.maximumf %0, %1 : vector<64x16xf32>
    %3 = vector.shape_cast %2 : vector<64x16xf32> to vector<64x8x2xf32>
    %cst = arith.constant dense<0xFF800000> : vector<64x8xf32>
    %4 = vector.multi_reduction <maximumf>, %3, %cst [2] : vector<64x8x2xf32> to vector<64x8xf32>
    %c0_2 = arith.constant 0 : index
    %c0_3 = arith.constant 0 : index
    %5 = vector.load %arg2[%c0_2, %c0_3] : memref<64x8xf32, #tpu.memory_space<vmem>>, vector<64x8xf32>
    tpu.vector_store %arg2[%c0_2, %c0_3], %4 {strides = array<i32>} : memref<64x8xf32, #tpu.memory_space<vmem>>, vector<64x8xf32>,
    return
  }
  func.func @transform_0(%arg0: i32) -> (i32, i32) {
    %c0_i32 = arith.constant 0 : i32
    %c0_i32_0 = arith.constant 0 : i32
    return %arg0, %c0_i32 : i32, i32
  }
  func.func @transform_1(%arg0: i32) -> (i32, i32) {
    %c0_i32 = arith.constant 0 : i32
    %c0_i32_0 = arith.constant 0 : i32
    return %arg0, %c0_i32 : i32, i32
  }
}

</mosaic_0001>

<llo_original>
// kernel: _maxpool2d_nchw.1
$region0: #{_maxpool2d_nchw.1}
  #allocation0 [shape = 'u32[]', space=smem, size = 0x4, offset = 0x4, fixed_abs, tag = 'smem constant byte address 0x4 - core index']
  #allocation1 [shape = 'u32[72,128]{1,0:T(1,128)}', space=vmem, size = 0x9000, scoped, tag = 'internal scratch']
  %s0 = inlined_call_operand.hbm [shape: f32[128,16], index: 0, kind: input, shape index: {}]
  %s1 = inlined_call_operand.hbm [shape: f32[64,8], index: 1, kind: output, shape index: {}]
  %s2 = sld [smem:[#allocation0]]
  $region18: #{_maxpool2d_nchw.1} parent=0
    _
  %s4 = ssub.s32 1, %s2
  %s5 = scalar_select 0, %s4, %s2
  $region1: #{_maxpool2d_nchw.1} parent=0
    #allocation2 [shape = 'u8[65536]{0}', space=vmem, size = 0x10000, scoped, tag = 'input window, operand 0, single buffered']
    #allocation3 [shape = 's32[1]{0}', space=sflag, size = 0x4, scoped, tag = 'scoped memory for _maxpool2d_nchw.1']
    #allocation4 [shape = 's32[1]{0}', space=sflag, size = 0x4, scoped, tag = 'scoped memory for _maxpool2d_nchw.1']
    #allocation5 [shape = 'u8[32768]{0}', space=vmem, size = 0x8000, scoped, tag = 'output window, operand 0, single buffered']
    %6 = vsyncpa [#allocation3], 0
    %7 = vsyncpa [#allocation4], 0
    // Predicated region
    $region2: #{_maxpool2d_nchw.1} parent=1 // pred_check
      _
    $region3: #{_maxpool2d_nchw.1} parent=1 // pred_check_branch
      %9 = sbr.rel (0) target = $region5
    $region4: #{_maxpool2d_nchw.1} parent=1 // pred_region
      %11 = vsyncadd [#allocation3], 0
      %s12 = sshll.u32 %s0, 4
      %s13 = int_to_ptr.hbm [resolvable:$true] %s12
      %s14 = sshll.u32 [#allocation2], 4
      %s15 = int_to_ptr.vmem [resolvable:$true] %s14
      %20 = dma.hbm_to_vmem [thread:$0]  %s13, 2048, %s15, [#allocation3], 128, 128, 8
    $region5: #{_maxpool2d_nchw.1} parent=1 // pred_fallthru
      _
    // Predicated region
    $region6: #{_maxpool2d_nchw.1} parent=1 // pred_check
      _
    $region7: #{_maxpool2d_nchw.1} parent=1 // pred_check_branch
      %22 = sbr.rel (0) target = $region9
    $region8: #{_maxpool2d_nchw.1} parent=1 // pred_region
      %24 = dma.done [#allocation3], 2048
    $region9: #{_maxpool2d_nchw.1} parent=1 // pred_fallthru
      _
    %v25 = vld [vmem:[#allocation2] ss:$2 sm:$0xff]
    %s26 = scalar_lea.vmem [#allocation2], 16
    %v27 = vld [vmem:[%s26] ss:$2 sm:$0xff]
    %s28 = scalar_lea.vmem [#allocation2], 32
    %v29 = vld [vmem:[%s28] ss:$2 sm:$0xff]
    %s30 = scalar_lea.vmem [#allocation2], 48
    %v31 = vld [vmem:[%s30] ss:$2 sm:$0xff]
    %s32 = scalar_lea.vmem [#allocation2], 64
    %v33 = vld [vmem:[%s32] ss:$2 sm:$0xff]
    %s34 = scalar_lea.vmem [#allocation2], 80
    %v35 = vld [vmem:[%s34] ss:$2 sm:$0xff]
    %s36 = scalar_lea.vmem [#allocation2], 96
    %v37 = vld [vmem:[%s36] ss:$2 sm:$0xff]
    %s38 = scalar_lea.vmem [#allocation2], 112
    %v39 = vld [vmem:[%s38] ss:$2 sm:$0xff]
    %s40 = scalar_lea.vmem [#allocation2], 1
    %v41 = vld [vmem:[%s40] ss:$2 sm:$0xff]
    %s42 = scalar_lea.vmem [#allocation2], 17
    %v43 = vld [vmem:[%s42] ss:$2 sm:$0xff]
    %s44 = scalar_lea.vmem [#allocation2], 33
    %v45 = vld [vmem:[%s44] ss:$2 sm:$0xff]
    %s46 = scalar_lea.vmem [#allocation2], 49
    %v47 = vld [vmem:[%s46] ss:$2 sm:$0xff]
    %s48 = scalar_lea.vmem [#allocation2], 65
    %v49 = vld [vmem:[%s48] ss:$2 sm:$0xff]
    %s50 = scalar_lea.vmem [#allocation2], 81
    %v51 = vld [vmem:[%s50] ss:$2 sm:$0xff]
    %s52 = scalar_lea.vmem [#allocation2], 97
    %v53 = vld [vmem:[%s52] ss:$2 sm:$0xff]
    %s54 = scalar_lea.vmem [#allocation2], 113
    %v55 = vld [vmem:[%s54] ss:$2 sm:$0xff]
    %v56 = vmax.f32 %v25, %v41
    %v57 = vmax.f32 %v27, %v43
    %v58 = vmax.f32 %v29, %v45
    %v59 = vmax.f32 %v31, %v47
    %v60 = vmax.f32 %v33, %v49
    %v61 = vmax.f32 %v35, %v51
    %v62 = vmax.f32 %v37, %v53
    %v63 = vmax.f32 %v39, %v55
    %72 = vrot.lane.b32.xlu0 %v56, 126
    %v73 = vpop.permute.xlu0 %72
    %74 = vrot.lane.b32.xlu0 %v57, 126
    %v75 = vpop.permute.xlu0 %74
    %76 = vrot.lane.b32.xlu0 %v58, 126
    %v77 = vpop.permute.xlu0 %76
    %78 = vrot.lane.b32.xlu0 %v59, 126
    %v79 = vpop.permute.xlu0 %78
    %80 = vrot.lane.b32.xlu0 %v60, 126
    %v81 = vpop.permute.xlu0 %80
    %82 = vrot.lane.b32.xlu0 %v61, 126
    %v83 = vpop.permute.xlu0 %82
    %84 = vrot.lane.b32.xlu0 %v62, 126
    %v85 = vpop.permute.xlu0 %84
    %86 = vrot.lane.b32.xlu0 %v63, 126
    %v87 = vpop.permute.xlu0 %86
    %96 = vrot.lane.b32.xlu0 %v56, 124
    %v97 = vpop.permute.xlu0 %96
    %98 = vrot.lane.b32.xlu0 %v57, 124
    %v99 = vpop.permute.xlu0 %98
    %100 = vrot.lane.b32.xlu0 %v58, 124
    %v101 = vpop.permute.xlu0 %100
    %102 = vrot.lane.b32.xlu0 %v59, 124
    %v103 = vpop.permute.xlu0 %102
    %104 = vrot.lane.b32.xlu0 %v60, 124
    %v105 = vpop.permute.xlu0 %104
    %106 = vrot.lane.b32.xlu0 %v61, 124
    %v107 = vpop.permute.xlu0 %106
    %108 = vrot.lane.b32.xlu0 %v62, 124
    %v109 = vpop.permute.xlu0 %108
    %110 = vrot.lane.b32.xlu0 %v63, 124
    %v111 = vpop.permute.xlu0 %110
    %120 = vrot.lane.b32.xlu0 %v56, 122
    %v121 = vpop.permute.xlu0 %120
    %122 = vrot.lane.b32.xlu0 %v57, 122
    %v123 = vpop.permute.xlu0 %122
    %124 = vrot.lane.b32.xlu0 %v58, 122
    %v125 = vpop.permute.xlu0 %124
    %126 = vrot.lane.b32.xlu0 %v59, 122
    %v127 = vpop.permute.xlu0 %126
    %128 = vrot.lane.b32.xlu0 %v60, 122
    %v129 = vpop.permute.xlu0 %128
    %130 = vrot.lane.b32.xlu0 %v61, 122
    %v131 = vpop.permute.xlu0 %130
    %132 = vrot.lane.b32.xlu0 %v62, 122
    %v133 = vpop.permute.xlu0 %132
    %134 = vrot.lane.b32.xlu0 %v63, 122
    %v135 = vpop.permute.xlu0 %134
    %144 = vrot.lane.b32.xlu0 %v56, 120
    %v145 = vpop.permute.xlu0 %144
    %146 = vrot.lane.b32.xlu0 %v57, 120
    %v147 = vpop.permute.xlu0 %146
    %148 = vrot.lane.b32.xlu0 %v58, 120
    %v149 = vpop.permute.xlu0 %148
    %150 = vrot.lane.b32.xlu0 %v59, 120
    %v151 = vpop.permute.xlu0 %150
    %152 = vrot.lane.b32.xlu0 %v60, 120
    %v153 = vpop.permute.xlu0 %152
    %154 = vrot.lane.b32.xlu0 %v61, 120
    %v155 = vpop.permute.xlu0 %154
    %156 = vrot.lane.b32.xlu0 %v62, 120
    %v157 = vpop.permute.xlu0 %156
    %158 = vrot.lane.b32.xlu0 %v63, 120
    %v159 = vpop.permute.xlu0 %158
    %168 = vrot.lane.b32.xlu0 %v56, 118
    %v169 = vpop.permute.xlu0 %168
    %170 = vrot.lane.b32.xlu0 %v57, 118
    %v171 = vpop.permute.xlu0 %170
    %172 = vrot.lane.b32.xlu0 %v58, 118
    %v173 = vpop.permute.xlu0 %172
    %174 = vrot.lane.b32.xlu0 %v59, 118
    %v175 = vpop.permute.xlu0 %174
    %176 = vrot.lane.b32.xlu0 %v60, 118
    %v177 = vpop.permute.xlu0 %176
    %178 = vrot.lane.b32.xlu0 %v61, 118
    %v179 = vpop.permute.xlu0 %178
    %180 = vrot.lane.b32.xlu0 %v62, 118
    %v181 = vpop.permute.xlu0 %180
    %182 = vrot.lane.b32.xlu0 %v63, 118
    %v183 = vpop.permute.xlu0 %182
    %192 = vrot.lane.b32.xlu0 %v56, 116
    %v193 = vpop.permute.xlu0 %192
    %194 = vrot.lane.b32.xlu0 %v57, 116
    %v195 = vpop.permute.xlu0 %194
    %196 = vrot.lane.b32.xlu0 %v58, 116
    %v197 = vpop.permute.xlu0 %196
    %198 = vrot.lane.b32.xlu0 %v59, 116
    %v199 = vpop.permute.xlu0 %198
    %200 = vrot.lane.b32.xlu0 %v60, 116
    %v201 = vpop.permute.xlu0 %200
    %202 = vrot.lane.b32.xlu0 %v61, 116
    %v203 = vpop.permute.xlu0 %202
    %204 = vrot.lane.b32.xlu0 %v62, 116
    %v205 = vpop.permute.xlu0 %204
    %206 = vrot.lane.b32.xlu0 %v63, 116
    %v207 = vpop.permute.xlu0 %206
    %216 = vrot.lane.b32.xlu0 %v56, 114
    %v217 = vpop.permute.xlu0 %216
    %218 = vrot.lane.b32.xlu0 %v57, 114
    %v219 = vpop.permute.xlu0 %218
    %220 = vrot.lane.b32.xlu0 %v58, 114
    %v221 = vpop.permute.xlu0 %220
    %222 = vrot.lane.b32.xlu0 %v59, 114
    %v223 = vpop.permute.xlu0 %222
    %224 = vrot.lane.b32.xlu0 %v60, 114
    %v225 = vpop.permute.xlu0 %224
    %226 = vrot.lane.b32.xlu0 %v61, 114
    %v227 = vpop.permute.xlu0 %226
    %228 = vrot.lane.b32.xlu0 %v62, 114
    %v229 = vpop.permute.xlu0 %228
    %230 = vrot.lane.b32.xlu0 %v63, 114
    %v231 = vpop.permute.xlu0 %230
    %v240 = vrot.slane %v97, 4
    %vm241 = vcmask 1047556
    %v242 = vsel %vm241, %v240, %v56
    %v243 = vrot.slane %v56, 4
    %v244 = vsel %vm241, %v97, %v243
    %v246 = vunpack.c.l.s4 1983009808
    %v247 = vunpack.c.0.s8 %v246
    %v248 = vperm.slane %v242, %v247
    %v250 = vunpack.c.l.s4 1983009808
    %v251 = vunpack.c.0.s8 %v250
    %v252 = vperm.slane %v244, %v251
    %v253 = vrot.slane %v121, 4
    %v254 = vsel %vm241, %v253, %v73
    %v255 = vrot.slane %v73, 4
    %v256 = vsel %vm241, %v121, %v255
    %v258 = vunpack.c.l.s4 1983009808
    %v259 = vunpack.c.0.s8 %v258
    %v260 = vperm.slane %v254, %v259
    %v262 = vunpack.c.l.s4 1983009808
    %v263 = vunpack.c.0.s8 %v262
    %v264 = vperm.slane %v256, %v263
    %v265 = vrot.slane %v193, 4
    %v266 = vsel %vm241, %v265, %v145
    %v267 = vrot.slane %v145, 4
    %v268 = vsel %vm241, %v193, %v267
    %v270 = vunpack.c.l.s4 1983009808
    %v271 = vunpack.c.0.s8 %v270
    %v272 = vperm.slane %v266, %v271
    %v274 = vunpack.c.l.s4 1983009808
    %v275 = vunpack.c.0.s8 %v274
    %v276 = vperm.slane %v268, %v275
    %v277 = vrot.slane %v217, 4
    %v278 = vsel %vm241, %v277, %v169
    %v279 = vrot.slane %v169, 4
    %v280 = vsel %vm241, %v217, %v279
    %v282 = vunpack.c.l.s4 1983009808
    %v283 = vunpack.c.0.s8 %v282
    %v284 = vperm.slane %v278, %v283
    %v286 = vunpack.c.l.s4 1983009808
    %v287 = vunpack.c.0.s8 %v286
    %v288 = vperm.slane %v280, %v287
    %v289 = vrot.slane %v260, 4
    %v290 = vsel %vm241, %v289, %v248
    %v291 = vrot.slane %v248, 4
    %v292 = vsel %vm241, %v260, %v291
    %v294 = vunpack.c.l.s4 1934713408
    %v295 = vunpack.c.0.s8 %v294
    %v296 = vperm.slane %v290, %v295
    %v298 = vunpack.c.l.s4 1934713408
    %v299 = vunpack.c.0.s8 %v298
    %v300 = vperm.slane %v292, %v299
    %v301 = vrot.slane %v264, 4
    %v302 = vsel %vm241, %v301, %v252
    %v303 = vrot.slane %v252, 4
    %v304 = vsel %vm241, %v264, %v303
    %v306 = vunpack.c.l.s4 1934713408
    %v307 = vunpack.c.0.s8 %v306
    %v308 = vperm.slane %v302, %v307
    %v310 = vunpack.c.l.s4 1934713408
    %v311 = vunpack.c.0.s8 %v310
    %v312 = vperm.slane %v304, %v311
    %v313 = vrot.slane %v284, 4
    %v314 = vsel %vm241, %v313, %v272
    %v315 = vrot.slane %v272, 4
    %v316 = vsel %vm241, %v284, %v315
    %v318 = vunpack.c.l.s4 1934713408
    %v319 = vunpack.c.0.s8 %v318
    %v320 = vperm.slane %v314, %v319
    %v322 = vunpack.c.l.s4 1934713408
    %v323 = vunpack.c.0.s8 %v322
    %v324 = vperm.slane %v316, %v323
    %v325 = vrot.slane %v288, 4
    %v326 = vsel %vm241, %v325, %v276
    %v327 = vrot.slane %v276, 4
    %v328 = vsel %vm241, %v288, %v327
    %v330 = vunpack.c.l.s4 1934713408
    %v331 = vunpack.c.0.s8 %v330
    %v332 = vperm.slane %v326, %v331
    %v334 = vunpack.c.l.s4 1934713408
    %v335 = vunpack.c.0.s8 %v334
    %v336 = vperm.slane %v328, %v335
    %v337 = vrot.slane %v320, 4
    %v338 = vsel %vm241, %v337, %v296
    %v339 = vrot.slane %v296, 4
    %v340 = vsel %vm241, %v320, %v339
    %v341 = vrot.slane %v324, 4
    %v342 = vsel %vm241, %v341, %v300
    %v343 = vrot.slane %v300, 4
    %v344 = vsel %vm241, %v324, %v343
    %v345 = vrot.slane %v332, 4
    %v346 = vsel %vm241, %v345, %v308
    %v347 = vrot.slane %v308, 4
    %v348 = vsel %vm241, %v332, %v347
    %v349 = vrot.slane %v336, 4
    %v350 = vsel %vm241, %v349, %v312
    %v351 = vrot.slane %v312, 4
    %v352 = vsel %vm241, %v336, %v351
    %v353 = vrot.slane %v99, 4
    %v354 = vsel %vm241, %v353, %v57
    %v355 = vrot.slane %v57, 4
    %v356 = vsel %vm241, %v99, %v355
    %v358 = vunpack.c.l.s4 1983009808
    %v359 = vunpack.c.0.s8 %v358
    %v360 = vperm.slane %v354, %v359
    %v362 = vunpack.c.l.s4 1983009808
    %v363 = vunpack.c.0.s8 %v362
    %v364 = vperm.slane %v356, %v363
    %v365 = vrot.slane %v123, 4
    %v366 = vsel %vm241, %v365, %v75
    %v367 = vrot.slane %v75, 4
    %v368 = vsel %vm241, %v123, %v367
    %v370 = vunpack.c.l.s4 1983009808
    %v371 = vunpack.c.0.s8 %v370
    %v372 = vperm.slane %v366, %v371
    %v374 = vunpack.c.l.s4 1983009808
    %v375 = vunpack.c.0.s8 %v374
    %v376 = vperm.slane %v368, %v375
    %v377 = vrot.slane %v195, 4
    %v378 = vsel %vm241, %v377, %v147
    %v379 = vrot.slane %v147, 4
    %v380 = vsel %vm241, %v195, %v379
    %v382 = vunpack.c.l.s4 1983009808
    %v383 = vunpack.c.0.s8 %v382
    %v384 = vperm.slane %v378, %v383
    %v386 = vunpack.c.l.s4 1983009808
    %v387 = vunpack.c.0.s8 %v386
    %v388 = vperm.slane %v380, %v387
    %v389 = vrot.slane %v219, 4
    %v390 = vsel %vm241, %v389, %v171
    %v391 = vrot.slane %v171, 4
    %v392 = vsel %vm241, %v219, %v391
    %v394 = vunpack.c.l.s4 1983009808
    %v395 = vunpack.c.0.s8 %v394
    %v396 = vperm.slane %v390, %v395
    %v398 = vunpack.c.l.s4 1983009808
    %v399 = vunpack.c.0.s8 %v398
    %v400 = vperm.slane %v392, %v399
    %v401 = vrot.slane %v372, 4
    %v402 = vsel %vm241, %v401, %v360
    %v403 = vrot.slane %v360, 4
    %v404 = vsel %vm241, %v372, %v403
    %v406 = vunpack.c.l.s4 1934713408
    %v407 = vunpack.c.0.s8 %v406
    %v408 = vperm.slane %v402, %v407
    %v410 = vunpack.c.l.s4 1934713408
    %v411 = vunpack.c.0.s8 %v410
    %v412 = vperm.slane %v404, %v411
    %v413 = vrot.slane %v376, 4
    %v414 = vsel %vm241, %v413, %v364
    %v415 = vrot.slane %v364, 4
    %v416 = vsel %vm241, %v376, %v415
    %v418 = vunpack.c.l.s4 1934713408
    %v419 = vunpack.c.0.s8 %v418
    %v420 = vperm.slane %v414, %v419
    %v422 = vunpack.c.l.s4 1934713408
    %v423 = vunpack.c.0.s8 %v422
    %v424 = vperm.slane %v416, %v423
    %v425 = vrot.slane %v396, 4
    %v426 = vsel %vm241, %v425, %v384
    %v427 = vrot.slane %v384, 4
    %v428 = vsel %vm241, %v396, %v427
    %v430 = vunpack.c.l.s4 1934713408
    %v431 = vunpack.c.0.s8 %v430
    %v432 = vperm.slane %v426, %v431
    %v434 = vunpack.c.l.s4 1934713408
    %v435 = vunpack.c.0.s8 %v434
    %v436 = vperm.slane %v428, %v435
    %v437 = vrot.slane %v400, 4
    %v438 = vsel %vm241, %v437, %v388
    %v439 = vrot.slane %v388, 4
    %v440 = vsel %vm241, %v400, %v439
    %v442 = vunpack.c.l.s4 1934713408
    %v443 = vunpack.c.0.s8 %v442
    %v444 = vperm.slane %v438, %v443
    %v446 = vunpack.c.l.s4 1934713408
    %v447 = vunpack.c.0.s8 %v446
    %v448 = vperm.slane %v440, %v447
    %v449 = vrot.slane %v432, 4
    %v450 = vsel %vm241, %v449, %v408
    %v451 = vrot.slane %v408, 4
    %v452 = vsel %vm241, %v432, %v451
    %v453 = vrot.slane %v436, 4
    %v454 = vsel %vm241, %v453, %v412
    %v455 = vrot.slane %v412, 4
    %v456 = vsel %vm241, %v436, %v455
    %v457 = vrot.slane %v444, 4
    %v458 = vsel %vm241, %v457, %v420
    %v459 = vrot.slane %v420, 4
    %v460 = vsel %vm241, %v444, %v459
    %v461 = vrot.slane %v448, 4
    %v462 = vsel %vm241, %v461, %v424
    %v463 = vrot.slane %v424, 4
    %v464 = vsel %vm241, %v448, %v463
    %v465 = vrot.slane %v101, 4
    %v466 = vsel %vm241, %v465, %v58
    %v467 = vrot.slane %v58, 4
    %v468 = vsel %vm241, %v101, %v467
    %v470 = vunpack.c.l.s4 1983009808
    %v471 = vunpack.c.0.s8 %v470
    %v472 = vperm.slane %v466, %v471
    %v474 = vunpack.c.l.s4 1983009808
    %v475 = vunpack.c.0.s8 %v474
    %v476 = vperm.slane %v468, %v475
    %v477 = vrot.slane %v125, 4
    %v478 = vsel %vm241, %v477, %v77
    %v479 = vrot.slane %v77, 4
    %v480 = vsel %vm241, %v125, %v479
    %v482 = vunpack.c.l.s4 1983009808
    %v483 = vunpack.c.0.s8 %v482
    %v484 = vperm.slane %v478, %v483
    %v486 = vunpack.c.l.s4 1983009808
    %v487 = vunpack.c.0.s8 %v486
    %v488 = vperm.slane %v480, %v487
    %v489 = vrot.slane %v197, 4
    %v490 = vsel %vm241, %v489, %v149
    %v491 = vrot.slane %v149, 4
    %v492 = vsel %vm241, %v197, %v491
    %v494 = vunpack.c.l.s4 1983009808
    %v495 = vunpack.c.0.s8 %v494
    %v496 = vperm.slane %v490, %v495
    %v498 = vunpack.c.l.s4 1983009808
    %v499 = vunpack.c.0.s8 %v498
    %v500 = vperm.slane %v492, %v499
    %v501 = vrot.slane %v221, 4
    %v502 = vsel %vm241, %v501, %v173
    %v503 = vrot.slane %v173, 4
    %v504 = vsel %vm241, %v221, %v503
    %v506 = vunpack.c.l.s4 1983009808
    %v507 = vunpack.c.0.s8 %v506
    %v508 = vperm.slane %v502, %v507
    %v510 = vunpack.c.l.s4 1983009808
    %v511 = vunpack.c.0.s8 %v510
    %v512 = vperm.slane %v504, %v511
    %v513 = vrot.slane %v484, 4
    %v514 = vsel %vm241, %v513, %v472
    %v515 = vrot.slane %v472, 4
    %v516 = vsel %vm241, %v484, %v515
    %v518 = vunpack.c.l.s4 1934713408
    %v519 = vunpack.c.0.s8 %v518
    %v520 = vperm.slane %v514, %v519
    %v522 = vunpack.c.l.s4 1934713408
    %v523 = vunpack.c.0.s8 %v522
    %v524 = vperm.slane %v516, %v523
    %v525 = vrot.slane %v488, 4
    %v526 = vsel %vm241, %v525, %v476
    %v527 = vrot.slane %v476, 4
    %v528 = vsel %vm241, %v488, %v527
    %v530 = vunpack.c.l.s4 1934713408
    %v531 = vunpack.c.0.s8 %v530
    %v532 = vperm.slane %v526, %v531
    %v534 = vunpack.c.l.s4 1934713408
    %v535 = vunpack.c.0.s8 %v534
    %v536 = vperm.slane %v528, %v535
    %v537 = vrot.slane %v508, 4
    %v538 = vsel %vm241, %v537, %v496
    %v539 = vrot.slane %v496, 4
    %v540 = vsel %vm241, %v508, %v539
    %v542 = vunpack.c.l.s4 1934713408
    %v543 = vunpack.c.0.s8 %v542
    %v544 = vperm.slane %v538, %v543
    %v546 = vunpack.c.l.s4 1934713408
    %v547 = vunpack.c.0.s8 %v546
    %v548 = vperm.slane %v540, %v547
    %v549 = vrot.slane %v512, 4
    %v550 = vsel %vm241, %v549, %v500
    %v551 = vrot.slane %v500, 4
    %v552 = vsel %vm241, %v512, %v551
    %v554 = vunpack.c.l.s4 1934713408
    %v555 = vunpack.c.0.s8 %v554
    %v556 = vperm.slane %v550, %v555
    %v558 = vunpack.c.l.s4 1934713408
    %v559 = vunpack.c.0.s8 %v558
    %v560 = vperm.slane %v552, %v559
    %v561 = vrot.slane %v544, 4
    %v562 = vsel %vm241, %v561, %v520
    %v563 = vrot.slane %v520, 4
    %v564 = vsel %vm241, %v544, %v563
    %v565 = vrot.slane %v548, 4
    %v566 = vsel %vm241, %v565, %v524
    %v567 = vrot.slane %v524, 4
    %v568 = vsel %vm241, %v548, %v567
    %v569 = vrot.slane %v556, 4
    %v570 = vsel %vm241, %v569, %v532
    %v571 = vrot.slane %v532, 4
    %v572 = vsel %vm241, %v556, %v571
    %v573 = vrot.slane %v560, 4
    %v574 = vsel %vm241, %v573, %v536
    %v575 = vrot.slane %v536, 4
    %v576 = vsel %vm241, %v560, %v575
    %v577 = vrot.slane %v103, 4
    %v578 = vsel %vm241, %v577, %v59
    %v579 = vrot.slane %v59, 4
    %v580 = vsel %vm241, %v103, %v579
    %v582 = vunpack.c.l.s4 1983009808
    %v583 = vunpack.c.0.s8 %v582
    %v584 = vperm.slane %v578, %v583
    %v586 = vunpack.c.l.s4 1983009808
    %v587 = vunpack.c.0.s8 %v586
    %v588 = vperm.slane %v580, %v587
    %v589 = vrot.slane %v127, 4
    %v590 = vsel %vm241, %v589, %v79
    %v591 = vrot.slane %v79, 4
    %v592 = vsel %vm241, %v127, %v591
    %v594 = vunpack.c.l.s4 1983009808
    %v595 = vunpack.c.0.s8 %v594
    %v596 = vperm.slane %v590, %v595
    %v598 = vunpack.c.l.s4 1983009808
    %v599 = vunpack.c.0.s8 %v598
    %v600 = vperm.slane %v592, %v599
    %v601 = vrot.slane %v199, 4
    %v602 = vsel %vm241, %v601, %v151
    %v603 = vrot.slane %v151, 4
    %v604 = vsel %vm241, %v199, %v603
    %v606 = vunpack.c.l.s4 1983009808
    %v607 = vunpack.c.0.s8 %v606
    %v608 = vperm.slane %v602, %v607
    %v610 = vunpack.c.l.s4 1983009808
    %v611 = vunpack.c.0.s8 %v610
    %v612 = vperm.slane %v604, %v611
    %v613 = vrot.slane %v223, 4
    %v614 = vsel %vm241, %v613, %v175
    %v615 = vrot.slane %v175, 4
    %v616 = vsel %vm241, %v223, %v615
    %v618 = vunpack.c.l.s4 1983009808
    %v619 = vunpack.c.0.s8 %v618
    %v620 = vperm.slane %v614, %v619
    %v622 = vunpack.c.l.s4 1983009808
    %v623 = vunpack.c.0.s8 %v622
    %v624 = vperm.slane %v616, %v623
    %v625 = vrot.slane %v596, 4
    %v626 = vsel %vm241, %v625, %v584
    %v627 = vrot.slane %v584, 4
    %v628 = vsel %vm241, %v596, %v627
    %v630 = vunpack.c.l.s4 1934713408
    %v631 = vunpack.c.0.s8 %v630
    %v632 = vperm.slane %v626, %v631
    %v634 = vunpack.c.l.s4 1934713408
    %v635 = vunpack.c.0.s8 %v634
    %v636 = vperm.slane %v628, %v635
    %v637 = vrot.slane %v600, 4
    %v638 = vsel %vm241, %v637, %v588
    %v639 = vrot.slane %v588, 4
    %v640 = vsel %vm241, %v600, %v639
    %v642 = vunpack.c.l.s4 1934713408
    %v643 = vunpack.c.0.s8 %v642
    %v644 = vperm.slane %v638, %v643
    %v646 = vunpack.c.l.s4 1934713408
    %v647 = vunpack.c.0.s8 %v646
    %v648 = vperm.slane %v640, %v647
    %v649 = vrot.slane %v620, 4
    %v650 = vsel %vm241, %v649, %v608
    %v651 = vrot.slane %v608, 4
    %v652 = vsel %vm241, %v620, %v651
    %v654 = vunpack.c.l.s4 1934713408
    %v655 = vunpack.c.0.s8 %v654
    %v656 = vperm.slane %v650, %v655
    %v658 = vunpack.c.l.s4 1934713408
    %v659 = vunpack.c.0.s8 %v658
    %v660 = vperm.slane %v652, %v659
    %v661 = vrot.slane %v624, 4
    %v662 = vsel %vm241, %v661, %v612
    %v663 = vrot.slane %v612, 4
    %v664 = vsel %vm241, %v624, %v663
    %v666 = vunpack.c.l.s4 1934713408
    %v667 = vunpack.c.0.s8 %v666
    %v668 = vperm.slane %v662, %v667
    %v670 = vunpack.c.l.s4 1934713408
    %v671 = vunpack.c.0.s8 %v670
    %v672 = vperm.slane %v664, %v671
    %v673 = vrot.slane %v656, 4
    %v674 = vsel %vm241, %v673, %v632
    %v675 = vrot.slane %v632, 4
    %v676 = vsel %vm241, %v656, %v675
    %v677 = vrot.slane %v660, 4
    %v678 = vsel %vm241, %v677, %v636
    %v679 = vrot.slane %v636, 4
    %v680 = vsel %vm241, %v660, %v679
    %v681 = vrot.slane %v668, 4
    %v682 = vsel %vm241, %v681, %v644
    %v683 = vrot.slane %v644, 4
    %v684 = vsel %vm241, %v668, %v683
    %v685 = vrot.slane %v672, 4
    %v686 = vsel %vm241, %v685, %v648
    %v687 = vrot.slane %v648, 4
    %v688 = vsel %vm241, %v672, %v687
    %v689 = vrot.slane %v105, 4
    %v690 = vsel %vm241, %v689, %v60
    %v691 = vrot.slane %v60, 4
    %v692 = vsel %vm241, %v105, %v691
    %v694 = vunpack.c.l.s4 1983009808
    %v695 = vunpack.c.0.s8 %v694
    %v696 = vperm.slane %v690, %v695
    %v698 = vunpack.c.l.s4 1983009808
    %v699 = vunpack.c.0.s8 %v698
    %v700 = vperm.slane %v692, %v699
    %v701 = vrot.slane %v129, 4
    %v702 = vsel %vm241, %v701, %v81
    %v703 = vrot.slane %v81, 4
    %v704 = vsel %vm241, %v129, %v703
    %v706 = vunpack.c.l.s4 1983009808
    %v707 = vunpack.c.0.s8 %v706
    %v708 = vperm.slane %v702, %v707
    %v710 = vunpack.c.l.s4 1983009808
    %v711 = vunpack.c.0.s8 %v710
    %v712 = vperm.slane %v704, %v711
    %v713 = vrot.slane %v201, 4
    %v714 = vsel %vm241, %v713, %v153
    %v715 = vrot.slane %v153, 4
    %v716 = vsel %vm241, %v201, %v715
    %v718 = vunpack.c.l.s4 1983009808
    %v719 = vunpack.c.0.s8 %v718
    %v720 = vperm.slane %v714, %v719
    %v722 = vunpack.c.l.s4 1983009808
    %v723 = vunpack.c.0.s8 %v722
    %v724 = vperm.slane %v716, %v723
    %v725 = vrot.slane %v225, 4
    %v726 = vsel %vm241, %v725, %v177
    %v727 = vrot.slane %v177, 4
    %v728 = vsel %vm241, %v225, %v727
    %v730 = vunpack.c.l.s4 1983009808
    %v731 = vunpack.c.0.s8 %v730
    %v732 = vperm.slane %v726, %v731
    %v734 = vunpack.c.l.s4 1983009808
    %v735 = vunpack.c.0.s8 %v734
    %v736 = vperm.slane %v728, %v735
    %v737 = vrot.slane %v708, 4
    %v738 = vsel %vm241, %v737, %v696
    %v739 = vrot.slane %v696, 4
    %v740 = vsel %vm241, %v708, %v739
    %v742 = vunpack.c.l.s4 1934713408
    %v743 = vunpack.c.0.s8 %v742
    %v744 = vperm.slane %v738, %v743
    %v746 = vunpack.c.l.s4 1934713408
    %v747 = vunpack.c.0.s8 %v746
    %v748 = vperm.slane %v740, %v747
    %v749 = vrot.slane %v712, 4
    %v750 = vsel %vm241, %v749, %v700
    %v751 = vrot.slane %v700, 4
    %v752 = vsel %vm241, %v712, %v751
    %v754 = vunpack.c.l.s4 1934713408
    %v755 = vunpack.c.0.s8 %v754
    %v756 = vperm.slane %v750, %v755
    %v758 = vunpack.c.l.s4 1934713408
    %v759 = vunpack.c.0.s8 %v758
    %v760 = vperm.slane %v752, %v759
    %v761 = vrot.slane %v732, 4
    %v762 = vsel %vm241, %v761, %v720
    %v763 = vrot.slane %v720, 4
    %v764 = vsel %vm241, %v732, %v763
    %v766 = vunpack.c.l.s4 1934713408
    %v767 = vunpack.c.0.s8 %v766
    %v768 = vperm.slane %v762, %v767
    %v770 = vunpack.c.l.s4 1934713408
    %v771 = vunpack.c.0.s8 %v770
    %v772 = vperm.slane %v764, %v771
    %v773 = vrot.slane %v736, 4
    %v774 = vsel %vm241, %v773, %v724
    %v775 = vrot.slane %v724, 4
    %v776 = vsel %vm241, %v736, %v775
    %v778 = vunpack.c.l.s4 1934713408
    %v779 = vunpack.c.0.s8 %v778
    %v780 = vperm.slane %v774, %v779
    %v782 = vunpack.c.l.s4 1934713408
    %v783 = vunpack.c.0.s8 %v782
    %v784 = vperm.slane %v776, %v783
    %v785 = vrot.slane %v768, 4
    %v786 = vsel %vm241, %v785, %v744
    %v787 = vrot.slane %v744, 4
    %v788 = vsel %vm241, %v768, %v787
    %v789 = vrot.slane %v772, 4
    %v790 = vsel %vm241, %v789, %v748
    %v791 = vrot.slane %v748, 4
    %v792 = vsel %vm241, %v772, %v791
    %v793 = vrot.slane %v780, 4
    %v794 = vsel %vm241, %v793, %v756
    %v795 = vrot.slane %v756, 4
    %v796 = vsel %vm241, %v780, %v795
    %v797 = vrot.slane %v784, 4
    %v798 = vsel %vm241, %v797, %v760
    %v799 = vrot.slane %v760, 4
    %v800 = vsel %vm241, %v784, %v799
    %v801 = vrot.slane %v107, 4
    %v802 = vsel %vm241, %v801, %v61
    %v803 = vrot.slane %v61, 4
    %v804 = vsel %vm241, %v107, %v803
    %v806 = vunpack.c.l.s4 1983009808
    %v807 = vunpack.c.0.s8 %v806
    %v808 = vperm.slane %v802, %v807
    %v810 = vunpack.c.l.s4 1983009808
    %v811 = vunpack.c.0.s8 %v810
    %v812 = vperm.slane %v804, %v811
    %v813 = vrot.slane %v131, 4
    %v814 = vsel %vm241, %v813, %v83
    %v815 = vrot.slane %v83, 4
    %v816 = vsel %vm241, %v131, %v815
    %v818 = vunpack.c.l.s4 1983009808
    %v819 = vunpack.c.0.s8 %v818
    %v820 = vperm.slane %v814, %v819
    %v822 = vunpack.c.l.s4 1983009808
    %v823 = vunpack.c.0.s8 %v822
    %v824 = vperm.slane %v816, %v823
    %v825 = vrot.slane %v203, 4
    %v826 = vsel %vm241, %v825, %v155
    %v827 = vrot.slane %v155, 4
    %v828 = vsel %vm241, %v203, %v827
    %v830 = vunpack.c.l.s4 1983009808
    %v831 = vunpack.c.0.s8 %v830
    %v832 = vperm.slane %v826, %v831
    %v834 = vunpack.c.l.s4 1983009808
    %v835 = vunpack.c.0.s8 %v834
    %v836 = vperm.slane %v828, %v835
    %v837 = vrot.slane %v227, 4
    %v838 = vsel %vm241, %v837, %v179
    %v839 = vrot.slane %v179, 4
    %v840 = vsel %vm241, %v227, %v839
    %v842 = vunpack.c.l.s4 1983009808
    %v843 = vunpack.c.0.s8 %v842
    %v844 = vperm.slane %v838, %v843
    %v846 = vunpack.c.l.s4 1983009808
    %v847 = vunpack.c.0.s8 %v846
    %v848 = vperm.slane %v840, %v847
    %v849 = vrot.slane %v820, 4
    %v850 = vsel %vm241, %v849, %v808
    %v851 = vrot.slane %v808, 4
    %v852 = vsel %vm241, %v820, %v851
    %v854 = vunpack.c.l.s4 1934713408
    %v855 = vunpack.c.0.s8 %v854
    %v856 = vperm.slane %v850, %v855
    %v858 = vunpack.c.l.s4 1934713408
    %v859 = vunpack.c.0.s8 %v858
    %v860 = vperm.slane %v852, %v859
    %v861 = vrot.slane %v824, 4
    %v862 = vsel %vm241, %v861, %v812
    %v863 = vrot.slane %v812, 4
    %v864 = vsel %vm241, %v824, %v863
    %v866 = vunpack.c.l.s4 1934713408
    %v867 = vunpack.c.0.s8 %v866
    %v868 = vperm.slane %v862, %v867
    %v870 = vunpack.c.l.s4 1934713408
    %v871 = vunpack.c.0.s8 %v870
    %v872 = vperm.slane %v864, %v871
    %v873 = vrot.slane %v844, 4
    %v874 = vsel %vm241, %v873, %v832
    %v875 = vrot.slane %v832, 4
    %v876 = vsel %vm241, %v844, %v875
    %v878 = vunpack.c.l.s4 1934713408
    %v879 = vunpack.c.0.s8 %v878
    %v880 = vperm.slane %v874, %v879
    %v882 = vunpack.c.l.s4 1934713408
    %v883 = vunpack.c.0.s8 %v882
    %v884 = vperm.slane %v876, %v883
    %v885 = vrot.slane %v848, 4
    %v886 = vsel %vm241, %v885, %v836
    %v887 = vrot.slane %v836, 4
    %v888 = vsel %vm241, %v848, %v887
    %v890 = vunpack.c.l.s4 1934713408
    %v891 = vunpack.c.0.s8 %v890
    %v892 = vperm.slane %v886, %v891
    %v894 = vunpack.c.l.s4 1934713408
    %v895 = vunpack.c.0.s8 %v894
    %v896 = vperm.slane %v888, %v895
    %v897 = vrot.slane %v880, 4
    %v898 = vsel %vm241, %v897, %v856
    %v899 = vrot.slane %v856, 4
    %v900 = vsel %vm241, %v880, %v899
    %v901 = vrot.slane %v884, 4
    %v902 = vsel %vm241, %v901, %v860
    %v903 = vrot.slane %v860, 4
    %v904 = vsel %vm241, %v884, %v903
    %v905 = vrot.slane %v892, 4
    %v906 = vsel %vm241, %v905, %v868
    %v907 = vrot.slane %v868, 4
    %v908 = vsel %vm241, %v892, %v907
    %v909 = vrot.slane %v896, 4
    %v910 = vsel %vm241, %v909, %v872
    %v911 = vrot.slane %v872, 4
    %v912 = vsel %vm241, %v896, %v911
    %v913 = vrot.slane %v109, 4
    %v914 = vsel %vm241, %v913, %v62
    %v915 = vrot.slane %v62, 4
    %v916 = vsel %vm241, %v109, %v915
    %v918 = vunpack.c.l.s4 1983009808
    %v919 = vunpack.c.0.s8 %v918
    %v920 = vperm.slane %v914, %v919
    %v922 = vunpack.c.l.s4 1983009808
    %v923 = vunpack.c.0.s8 %v922
    %v924 = vperm.slane %v916, %v923
    %v925 = vrot.slane %v133, 4
    %v926 = vsel %vm241, %v925, %v85
    %v927 = vrot.slane %v85, 4
    %v928 = vsel %vm241, %v133, %v927
    %v930 = vunpack.c.l.s4 1983009808
    %v931 = vunpack.c.0.s8 %v930
    %v932 = vperm.slane %v926, %v931
    %v934 = vunpack.c.l.s4 1983009808
    %v935 = vunpack.c.0.s8 %v934
    %v936 = vperm.slane %v928, %v935
    %v937 = vrot.slane %v205, 4
    %v938 = vsel %vm241, %v937, %v157
    %v939 = vrot.slane %v157, 4
    %v940 = vsel %vm241, %v205, %v939
    %v942 = vunpack.c.l.s4 1983009808
    %v943 = vunpack.c.0.s8 %v942
    %v944 = vperm.slane %v938, %v943
    %v946 = vunpack.c.l.s4 1983009808
    %v947 = vunpack.c.0.s8 %v946
    %v948 = vperm.slane %v940, %v947
    %v949 = vrot.slane %v229, 4
    %v950 = vsel %vm241, %v949, %v181
    %v951 = vrot.slane %v181, 4
    %v952 = vsel %vm241, %v229, %v951
    %v954 = vunpack.c.l.s4 1983009808
    %v955 = vunpack.c.0.s8 %v954
    %v956 = vperm.slane %v950, %v955
    %v958 = vunpack.c.l.s4 1983009808
    %v959 = vunpack.c.0.s8 %v958
    %v960 = vperm.slane %v952, %v959
    %v961 = vrot.slane %v932, 4
    %v962 = vsel %vm241, %v961, %v920
    %v963 = vrot.slane %v920, 4
    %v964 = vsel %vm241, %v932, %v963
    %v966 = vunpack.c.l.s4 1934713408
    %v967 = vunpack.c.0.s8 %v966
    %v968 = vperm.slane %v962, %v967
    %v970 = vunpack.c.l.s4 1934713408
    %v971 = vunpack.c.0.s8 %v970
    %v972 = vperm.slane %v964, %v971
    %v973 = vrot.slane %v936, 4
    %v974 = vsel %vm241, %v973, %v924
    %v975 = vrot.slane %v924, 4
    %v976 = vsel %vm241, %v936, %v975
    %v978 = vunpack.c.l.s4 1934713408
    %v979 = vunpack.c.0.s8 %v978
    %v980 = vperm.slane %v974, %v979
    %v982 = vunpack.c.l.s4 1934713408
    %v983 = vunpack.c.0.s8 %v982
    %v984 = vperm.slane %v976, %v983
    %v985 = vrot.slane %v956, 4
    %v986 = vsel %vm241, %v985, %v944
    %v987 = vrot.slane %v944, 4
    %v988 = vsel %vm241, %v956, %v987
    %v990 = vunpack.c.l.s4 1934713408
    %v991 = vunpack.c.0.s8 %v990
    %v992 = vperm.slane %v986, %v991
    %v994 = vunpack.c.l.s4 1934713408
    %v995 = vunpack.c.0.s8 %v994
    %v996 = vperm.slane %v988, %v995
    %v997 = vrot.slane %v960, 4
    %v998 = vsel %vm241, %v997, %v948
    %v999 = vrot.slane %v948, 4
    %v1000 = vsel %vm241, %v960, %v999
    %v1002 = vunpack.c.l.s4 1934713408
    %v1003 = vunpack.c.0.s8 %v1002
    %v1004 = vperm.slane %v998, %v1003
    %v1006 = vunpack.c.l.s4 1934713408
    %v1007 = vunpack.c.0.s8 %v1006
    %v1008 = vperm.slane %v1000, %v1007
    %v1009 = vrot.slane %v992, 4
    %v1010 = vsel %vm241, %v1009, %v968
    %v1011 = vrot.slane %v968, 4
    %v1012 = vsel %vm241, %v992, %v1011
    %v1013 = vrot.slane %v996, 4
    %v1014 = vsel %vm241, %v1013, %v972
    %v1015 = vrot.slane %v972, 4
    %v1016 = vsel %vm241, %v996, %v1015
    %v1017 = vrot.slane %v1004, 4
    %v1018 = vsel %vm241, %v1017, %v980
    %v1019 = vrot.slane %v980, 4
    %v1020 = vsel %vm241, %v1004, %v1019
    %v1021 = vrot.slane %v1008, 4
    %v1022 = vsel %vm241, %v1021, %v984
    %v1023 = vrot.slane %v984, 4
    %v1024 = vsel %vm241, %v1008, %v1023
    %v1025 = vrot.slane %v111, 4
    %v1026 = vsel %vm241, %v1025, %v63
    %v1027 = vrot.slane %v63, 4
    %v1028 = vsel %vm241, %v111, %v1027
    %v1030 = vunpack.c.l.s4 1983009808
    %v1031 = vunpack.c.0.s8 %v1030
    %v1032 = vperm.slane %v1026, %v1031
    %v1034 = vunpack.c.l.s4 1983009808
    %v1035 = vunpack.c.0.s8 %v1034
    %v1036 = vperm.slane %v1028, %v1035
    %v1037 = vrot.slane %v135, 4
    %v1038 = vsel %vm241, %v1037, %v87
    %v1039 = vrot.slane %v87, 4
    %v1040 = vsel %vm241, %v135, %v1039
    %v1042 = vunpack.c.l.s4 1983009808
    %v1043 = vunpack.c.0.s8 %v1042
    %v1044 = vperm.slane %v1038, %v1043
    %v1046 = vunpack.c.l.s4 1983009808
    %v1047 = vunpack.c.0.s8 %v1046
    %v1048 = vperm.slane %v1040, %v1047
    %v1049 = vrot.slane %v207, 4
    %v1050 = vsel %vm241, %v1049, %v159
    %v1051 = vrot.slane %v159, 4
    %v1052 = vsel %vm241, %v207, %v1051
    %v1054 = vunpack.c.l.s4 1983009808
    %v1055 = vunpack.c.0.s8 %v1054
    %v1056 = vperm.slane %v1050, %v1055
    %v1058 = vunpack.c.l.s4 1983009808
    %v1059 = vunpack.c.0.s8 %v1058
    %v1060 = vperm.slane %v1052, %v1059
    %v1061 = vrot.slane %v231, 4
    %v1062 = vsel %vm241, %v1061, %v183
    %v1063 = vrot.slane %v183, 4
    %v1064 = vsel %vm241, %v231, %v1063
    %v1066 = vunpack.c.l.s4 1983009808
    %v1067 = vunpack.c.0.s8 %v1066
    %v1068 = vperm.slane %v1062, %v1067
    %v1070 = vunpack.c.l.s4 1983009808
    %v1071 = vunpack.c.0.s8 %v1070
    %v1072 = vperm.slane %v1064, %v1071
    %v1073 = vrot.slane %v1044, 4
    %v1074 = vsel %vm241, %v1073, %v1032
    %v1075 = vrot.slane %v1032, 4
    %v1076 = vsel %vm241, %v1044, %v1075
    %v1078 = vunpack.c.l.s4 1934713408
    %v1079 = vunpack.c.0.s8 %v1078
    %v1080 = vperm.slane %v1074, %v1079
    %v1082 = vunpack.c.l.s4 1934713408
    %v1083 = vunpack.c.0.s8 %v1082
    %v1084 = vperm.slane %v1076, %v1083
    %v1085 = vrot.slane %v1048, 4
    %v1086 = vsel %vm241, %v1085, %v1036
    %v1087 = vrot.slane %v1036, 4
    %v1088 = vsel %vm241, %v1048, %v1087
    %v1090 = vunpack.c.l.s4 1934713408
    %v1091 = vunpack.c.0.s8 %v1090
    %v1092 = vperm.slane %v1086, %v1091
    %v1094 = vunpack.c.l.s4 1934713408
    %v1095 = vunpack.c.0.s8 %v1094
    %v1096 = vperm.slane %v1088, %v1095
    %v1097 = vrot.slane %v1068, 4
    %v1098 = vsel %vm241, %v1097, %v1056
    %v1099 = vrot.slane %v1056, 4
    %v1100 = vsel %vm241, %v1068, %v1099
    %v1102 = vunpack.c.l.s4 1934713408
    %v1103 = vunpack.c.0.s8 %v1102
    %v1104 = vperm.slane %v1098, %v1103
    %v1106 = vunpack.c.l.s4 1934713408
    %v1107 = vunpack.c.0.s8 %v1106
    %v1108 = vperm.slane %v1100, %v1107
    %v1109 = vrot.slane %v1072, 4
    %v1110 = vsel %vm241, %v1109, %v1060
    %v1111 = vrot.slane %v1060, 4
    %v1112 = vsel %vm241, %v1072, %v1111
    %v1114 = vunpack.c.l.s4 1934713408
    %v1115 = vunpack.c.0.s8 %v1114
    %v1116 = vperm.slane %v1110, %v1115
    %v1118 = vunpack.c.l.s4 1934713408
    %v1119 = vunpack.c.0.s8 %v1118
    %v1120 = vperm.slane %v1112, %v1119
    %v1121 = vrot.slane %v1104, 4
    %v1122 = vsel %vm241, %v1121, %v1080
    %v1123 = vrot.slane %v1080, 4
    %v1124 = vsel %vm241, %v1104, %v1123
    %v1125 = vrot.slane %v1108, 4
    %v1126 = vsel %vm241, %v1125, %v1084
    %v1127 = vrot.slane %v1084, 4
    %v1128 = vsel %vm241, %v1108, %v1127
    %v1129 = vrot.slane %v1116, 4
    %v1130 = vsel %vm241, %v1129, %v1092
    %v1131 = vrot.slane %v1092, 4
    %v1132 = vsel %vm241, %v1116, %v1131
    %v1133 = vrot.slane %v1120, 4
    %v1134 = vsel %vm241, %v1133, %v1096
    %v1135 = vrot.slane %v1096, 4
    %v1136 = vsel %vm241, %v1120, %v1135
    %vm1137 = vcmask 15360
    %v1138 = vsel %vm1137, %v338, -inf
    %1139 = vmax.xlane.f32.xlu0 %v1138
    %v1140 = vpop.xlane.xlu0 %1139
    %v1141 = vsel %vm1137, %v340, -inf
    %1142 = vmax.xlane.f32.xlu0 %v1141
    %v1143 = vpop.xlane.xlu0 %1142
    %v1144 = vsel %vm1137, %v342, -inf
    %1145 = vmax.xlane.f32.xlu0 %v1144
    %v1146 = vpop.xlane.xlu0 %1145
    %v1147 = vsel %vm1137, %v344, -inf
    %1148 = vmax.xlane.f32.xlu0 %v1147
    %v1149 = vpop.xlane.xlu0 %1148
    %v1150 = vsel %vm1137, %v346, -inf
    %1151 = vmax.xlane.f32.xlu0 %v1150
    %v1152 = vpop.xlane.xlu0 %1151
    %v1153 = vsel %vm1137, %v348, -inf
    %1154 = vmax.xlane.f32.xlu0 %v1153
    %v1155 = vpop.xlane.xlu0 %1154
    %v1156 = vsel %vm1137, %v350, -inf
    %1157 = vmax.xlane.f32.xlu0 %v1156
    %v1158 = vpop.xlane.xlu0 %1157
    %v1159 = vsel %vm1137, %v352, -inf
    %1160 = vmax.xlane.f32.xlu0 %v1159
    %v1161 = vpop.xlane.xlu0 %1160
    %v1162 = vsel %vm1137, %v450, -inf
    %1163 = vmax.xlane.f32.xlu0 %v1162
    %v1164 = vpop.xlane.xlu0 %1163
    %v1165 = vsel %vm1137, %v452, -inf
    %1166 = vmax.xlane.f32.xlu0 %v1165
    %v1167 = vpop.xlane.xlu0 %1166
    %v1168 = vsel %vm1137, %v454, -inf
    %1169 = vmax.xlane.f32.xlu0 %v1168
    %v1170 = vpop.xlane.xlu0 %1169
    %v1171 = vsel %vm1137, %v456, -inf
    %1172 = vmax.xlane.f32.xlu0 %v1171
    %v1173 = vpop.xlane.xlu0 %1172
    %v1174 = vsel %vm1137, %v458, -inf
    %1175 = vmax.xlane.f32.xlu0 %v1174
    %v1176 = vpop.xlane.xlu0 %1175
    %v1177 = vsel %vm1137, %v460, -inf
    %1178 = vmax.xlane.f32.xlu0 %v1177
    %v1179 = vpop.xlane.xlu0 %1178
    %v1180 = vsel %vm1137, %v462, -inf
    %1181 = vmax.xlane.f32.xlu0 %v1180
    %v1182 = vpop.xlane.xlu0 %1181
    %v1183 = vsel %vm1137, %v464, -inf
    %1184 = vmax.xlane.f32.xlu0 %v1183
    %v1185 = vpop.xlane.xlu0 %1184
    %v1186 = vsel %vm1137, %v562, -inf
    %1187 = vmax.xlane.f32.xlu0 %v1186
    %v1188 = vpop.xlane.xlu0 %1187
    %v1189 = vsel %vm1137, %v564, -inf
    %1190 = vmax.xlane.f32.xlu0 %v1189
    %v1191 = vpop.xlane.xlu0 %1190
    %v1192 = vsel %vm1137, %v566, -inf
    %1193 = vmax.xlane.f32.xlu0 %v1192
    %v1194 = vpop.xlane.xlu0 %1193
    %v1195 = vsel %vm1137, %v568, -inf
    %1196 = vmax.xlane.f32.xlu0 %v1195
    %v1197 = vpop.xlane.xlu0 %1196
    %v1198 = vsel %vm1137, %v570, -inf
    %1199 = vmax.xlane.f32.xlu0 %v1198
    %v1200 = vpop.xlane.xlu0 %1199
    %v1201 = vsel %vm1137, %v572, -inf
    %1202 = vmax.xlane.f32.xlu0 %v1201
    %v1203 = vpop.xlane.xlu0 %1202
    %v1204 = vsel %vm1137, %v574, -inf
    %1205 = vmax.xlane.f32.xlu0 %v1204
    %v1206 = vpop.xlane.xlu0 %1205
    %v1207 = vsel %vm1137, %v576, -inf
    %1208 = vmax.xlane.f32.xlu0 %v1207
    %v1209 = vpop.xlane.xlu0 %1208
    %v1210 = vsel %vm1137, %v674, -inf
    %1211 = vmax.xlane.f32.xlu0 %v1210
    %v1212 = vpop.xlane.xlu0 %1211
    %v1213 = vsel %vm1137, %v676, -inf
    %1214 = vmax.xlane.f32.xlu0 %v1213
    %v1215 = vpop.xlane.xlu0 %1214
    %v1216 = vsel %vm1137, %v678, -inf
    %1217 = vmax.xlane.f32.xlu0 %v1216
    %v1218 = vpop.xlane.xlu0 %1217
    %v1219 = vsel %vm1137, %v680, -inf
    %1220 = vmax.xlane.f32.xlu0 %v1219
    %v1221 = vpop.xlane.xlu0 %1220
    %v1222 = vsel %vm1137, %v682, -inf
    %1223 = vmax.xlane.f32.xlu0 %v1222
    %v1224 = vpop.xlane.xlu0 %1223
    %v1225 = vsel %vm1137, %v684, -inf
    %1226 = vmax.xlane.f32.xlu0 %v1225
    %v1227 = vpop.xlane.xlu0 %1226
    %v1228 = vsel %vm1137, %v686, -inf
    %1229 = vmax.xlane.f32.xlu0 %v1228
    %v1230 = vpop.xlane.xlu0 %1229
    %v1231 = vsel %vm1137, %v688, -inf
    %1232 = vmax.xlane.f32.xlu0 %v1231
    %v1233 = vpop.xlane.xlu0 %1232
    %v1234 = vsel %vm1137, %v786, -inf
    %1235 = vmax.xlane.f32.xlu0 %v1234
    %v1236 = vpop.xlane.xlu0 %1235
    %v1237 = vsel %vm1137, %v788, -inf
    %1238 = vmax.xlane.f32.xlu0 %v1237
    %v1239 = vpop.xlane.xlu0 %1238
    %v1240 = vsel %vm1137, %v790, -inf
    %1241 = vmax.xlane.f32.xlu0 %v1240
    %v1242 = vpop.xlane.xlu0 %1241
    %v1243 = vsel %vm1137, %v792, -inf
    %1244 = vmax.xlane.f32.xlu0 %v1243
    %v1245 = vpop.xlane.xlu0 %1244
    %v1246 = vsel %vm1137, %v794, -inf
    %1247 = vmax.xlane.f32.xlu0 %v1246
    %v1248 = vpop.xlane.xlu0 %1247
    %v1249 = vsel %vm1137, %v796, -inf
    %1250 = vmax.xlane.f32.xlu0 %v1249
    %v1251 = vpop.xlane.xlu0 %1250
    %v1252 = vsel %vm1137, %v798, -inf
    %1253 = vmax.xlane.f32.xlu0 %v1252
    %v1254 = vpop.xlane.xlu0 %1253
    %v1255 = vsel %vm1137, %v800, -inf
    %1256 = vmax.xlane.f32.xlu0 %v1255
    %v1257 = vpop.xlane.xlu0 %1256
    %v1258 = vsel %vm1137, %v898, -inf
    %1259 = vmax.xlane.f32.xlu0 %v1258
    %v1260 = vpop.xlane.xlu0 %1259
    %v1261 = vsel %vm1137, %v900, -inf
    %1262 = vmax.xlane.f32.xlu0 %v1261
    %v1263 = vpop.xlane.xlu0 %1262
    %v1264 = vsel %vm1137, %v902, -inf
    %1265 = vmax.xlane.f32.xlu0 %v1264
    %v1266 = vpop.xlane.xlu0 %1265
    %v1267 = vsel %vm1137, %v904, -inf
    %1268 = vmax.xlane.f32.xlu0 %v1267
    %v1269 = vpop.xlane.xlu0 %1268
    %v1270 = vsel %vm1137, %v906, -inf
    %1271 = vmax.xlane.f32.xlu0 %v1270
    %v1272 = vpop.xlane.xlu0 %1271
    %v1273 = vsel %vm1137, %v908, -inf
    %1274 = vmax.xlane.f32.xlu0 %v1273
    %v1275 = vpop.xlane.xlu0 %1274
    %v1276 = vsel %vm1137, %v910, -inf
    %1277 = vmax.xlane.f32.xlu0 %v1276
    %v1278 = vpop.xlane.xlu0 %1277
    %v1279 = vsel %vm1137, %v912, -inf
    %1280 = vmax.xlane.f32.xlu0 %v1279
    %v1281 = vpop.xlane.xlu0 %1280
    %v1282 = vsel %vm1137, %v1010, -inf
    %1283 = vmax.xlane.f32.xlu0 %v1282
    %v1284 = vpop.xlane.xlu0 %1283
    %v1285 = vsel %vm1137, %v1012, -inf
    %1286 = vmax.xlane.f32.xlu0 %v1285
    %v1287 = vpop.xlane.xlu0 %1286
    %v1288 = vsel %vm1137, %v1014, -inf
    %1289 = vmax.xlane.f32.xlu0 %v1288
    %v1290 = vpop.xlane.xlu0 %1289
    %v1291 = vsel %vm1137, %v1016, -inf
    %1292 = vmax.xlane.f32.xlu0 %v1291
    %v1293 = vpop.xlane.xlu0 %1292
    %v1294 = vsel %vm1137, %v1018, -inf
    %1295 = vmax.xlane.f32.xlu0 %v1294
    %v1296 = vpop.xlane.xlu0 %1295
    %v1297 = vsel %vm1137, %v1020, -inf
    %1298 = vmax.xlane.f32.xlu0 %v1297
    %v1299 = vpop.xlane.xlu0 %1298
    %v1300 = vsel %vm1137, %v1022, -inf
    %1301 = vmax.xlane.f32.xlu0 %v1300
    %v1302 = vpop.xlane.xlu0 %1301
    %v1303 = vsel %vm1137, %v1024, -inf
    %1304 = vmax.xlane.f32.xlu0 %v1303
    %v1305 = vpop.xlane.xlu0 %1304
    %v1306 = vsel %vm1137, %v1122, -inf
    %1307 = vmax.xlane.f32.xlu0 %v1306
    %v1308 = vpop.xlane.xlu0 %1307
    %v1309 = vsel %vm1137, %v1124, -inf
    %1310 = vmax.xlane.f32.xlu0 %v1309
    %v1311 = vpop.xlane.xlu0 %1310
    %v1312 = vsel %vm1137, %v1126, -inf
    %1313 = vmax.xlane.f32.xlu0 %v1312
    %v1314 = vpop.xlane.xlu0 %1313
    %v1315 = vsel %vm1137, %v1128, -inf
    %1316 = vmax.xlane.f32.xlu0 %v1315
    %v1317 = vpop.xlane.xlu0 %1316
    %v1318 = vsel %vm1137, %v1130, -inf
    %1319 = vmax.xlane.f32.xlu0 %v1318
    %v1320 = vpop.xlane.xlu0 %1319
    %v1321 = vsel %vm1137, %v1132, -inf
    %1322 = vmax.xlane.f32.xlu0 %v1321
    %v1323 = vpop.xlane.xlu0 %1322
    %v1324 = vsel %vm1137, %v1134, -inf
    %1325 = vmax.xlane.f32.xlu0 %v1324
    %v1326 = vpop.xlane.xlu0 %1325
    %v1327 = vsel %vm1137, %v1136, -inf
    %1328 = vmax.xlane.f32.xlu0 %v1327
    %v1329 = vpop.xlane.xlu0 %1328
    %v1394 = vlaneseq
    %v1395 = vand.u32 %v1394, 127
    %v1396 = vperm.slane %v1140, %v1395
    %v1397 = vperm.slane %v1143, %v1395
    %v1398 = vperm.slane %v1146, %v1395
    %v1399 = vperm.slane %v1149, %v1395
    %v1400 = vperm.slane %v1152, %v1395
    %v1401 = vperm.slane %v1155, %v1395
    %v1402 = vperm.slane %v1158, %v1395
    %v1403 = vperm.slane %v1161, %v1395
    %v1404 = vperm.slane %v1164, %v1395
    %v1405 = vperm.slane %v1167, %v1395
    %v1406 = vperm.slane %v1170, %v1395
    %v1407 = vperm.slane %v1173, %v1395
    %v1408 = vperm.slane %v1176, %v1395
    %v1409 = vperm.slane %v1179, %v1395
    %v1410 = vperm.slane %v1182, %v1395
    %v1411 = vperm.slane %v1185, %v1395
    %v1412 = vperm.slane %v1188, %v1395
    %v1413 = vperm.slane %v1191, %v1395
    %v1414 = vperm.slane %v1194, %v1395
    %v1415 = vperm.slane %v1197, %v1395
    %v1416 = vperm.slane %v1200, %v1395
    %v1417 = vperm.slane %v1203, %v1395
    %v1418 = vperm.slane %v1206, %v1395
    %v1419 = vperm.slane %v1209, %v1395
    %v1420 = vperm.slane %v1212, %v1395
    %v1421 = vperm.slane %v1215, %v1395
    %v1422 = vperm.slane %v1218, %v1395
    %v1423 = vperm.slane %v1221, %v1395
    %v1424 = vperm.slane %v1224, %v1395
    %v1425 = vperm.slane %v1227, %v1395
    %v1426 = vperm.slane %v1230, %v1395
    %v1427 = vperm.slane %v1233, %v1395
    %v1428 = vperm.slane %v1236, %v1395
    %v1429 = vperm.slane %v1239, %v1395
    %v1430 = vperm.slane %v1242, %v1395
    %v1431 = vperm.slane %v1245, %v1395
    %v1432 = vperm.slane %v1248, %v1395
    %v1433 = vperm.slane %v1251, %v1395
    %v1434 = vperm.slane %v1254, %v1395
    %v1435 = vperm.slane %v1257, %v1395
    %v1436 = vperm.slane %v1260, %v1395
    %v1437 = vperm.slane %v1263, %v1395
    %v1438 = vperm.slane %v1266, %v1395
    %v1439 = vperm.slane %v1269, %v1395
    %v1440 = vperm.slane %v1272, %v1395
    %v1441 = vperm.slane %v1275, %v1395
    %v1442 = vperm.slane %v1278, %v1395
    %v1443 = vperm.slane %v1281, %v1395
    %v1444 = vperm.slane %v1284, %v1395
    %v1445 = vperm.slane %v1287, %v1395
    %v1446 = vperm.slane %v1290, %v1395
    %v1447 = vperm.slane %v1293, %v1395
    %v1448 = vperm.slane %v1296, %v1395
    %v1449 = vperm.slane %v1299, %v1395
    %v1450 = vperm.slane %v1302, %v1395
    %v1451 = vperm.slane %v1305, %v1395
    %v1452 = vperm.slane %v1308, %v1395
    %v1453 = vperm.slane %v1311, %v1395
    %v1454 = vperm.slane %v1314, %v1395
    %v1455 = vperm.slane %v1317, %v1395
    %v1456 = vperm.slane %v1320, %v1395
    %v1457 = vperm.slane %v1323, %v1395
    %v1458 = vperm.slane %v1326, %v1395
    %v1459 = vperm.slane %v1329, %v1395
    %vm1460 = vcmask 1041409
    %v1461 = vsel %vm1460, %v1397, %v1396
    %vm1462 = vcmask 1042434
    %v1463 = vsel %vm1462, %v1398, %v1461
    %vm1464 = vcmask 1043459
    %v1465 = vsel %vm1464, %v1399, %v1463
    %vm1466 = vcmask 1044484
    %v1467 = vsel %vm1466, %v1400, %v1465
    %vm1468 = vcmask 1045509
    %v1469 = vsel %vm1468, %v1401, %v1467
    %vm1470 = vcmask 1046534
    %v1471 = vsel %vm1470, %v1402, %v1469
    %vm1472 = vcmask 1047559
    %v1473 = vsel %vm1472, %v1403, %v1471
    %v1474 = vsel %vm1460, %v1405, %v1404
    %v1475 = vsel %vm1462, %v1406, %v1474
    %v1476 = vsel %vm1464, %v1407, %v1475
    %v1477 = vsel %vm1466, %v1408, %v1476
    %v1478 = vsel %vm1468, %v1409, %v1477
    %v1479 = vsel %vm1470, %v1410, %v1478
    %v1480 = vsel %vm1472, %v1411, %v1479
    %v1481 = vsel %vm1460, %v1413, %v1412
    %v1482 = vsel %vm1462, %v1414, %v1481
    %v1483 = vsel %vm1464, %v1415, %v1482
    %v1484 = vsel %vm1466, %v1416, %v1483
    %v1485 = vsel %vm1468, %v1417, %v1484
    %v1486 = vsel %vm1470, %v1418, %v1485
    %v1487 = vsel %vm1472, %v1419, %v1486
    %v1488 = vsel %vm1460, %v1421, %v1420
    %v1489 = vsel %vm1462, %v1422, %v1488
    %v1490 = vsel %vm1464, %v1423, %v1489
    %v1491 = vsel %vm1466, %v1424, %v1490
    %v1492 = vsel %vm1468, %v1425, %v1491
    %v1493 = vsel %vm1470, %v1426, %v1492
    %v1494 = vsel %vm1472, %v1427, %v1493
    %v1495 = vsel %vm1460, %v1429, %v1428
    %v1496 = vsel %vm1462, %v1430, %v1495
    %v1497 = vsel %vm1464, %v1431, %v1496
    %v1498 = vsel %vm1466, %v1432, %v1497
    %v1499 = vsel %vm1468, %v1433, %v1498
    %v1500 = vsel %vm1470, %v1434, %v1499
    %v1501 = vsel %vm1472, %v1435, %v1500
    %v1502 = vsel %vm1460, %v1437, %v1436
    %v1503 = vsel %vm1462, %v1438, %v1502
    %v1504 = vsel %vm1464, %v1439, %v1503
    %v1505 = vsel %vm1466, %v1440, %v1504
    %v1506 = vsel %vm1468, %v1441, %v1505
    %v1507 = vsel %vm1470, %v1442, %v1506
    %v1508 = vsel %vm1472, %v1443, %v1507
    %v1509 = vsel %vm1460, %v1445, %v1444
    %v1510 = vsel %vm1462, %v1446, %v1509
    %v1511 = vsel %vm1464, %v1447, %v1510
    %v1512 = vsel %vm1466, %v1448, %v1511
    %v1513 = vsel %vm1468, %v1449, %v1512
    %v1514 = vsel %vm1470, %v1450, %v1513
    %v1515 = vsel %vm1472, %v1451, %v1514
    %v1516 = vsel %vm1460, %v1453, %v1452
    %v1517 = vsel %vm1462, %v1454, %v1516
    %v1518 = vsel %vm1464, %v1455, %v1517
    %v1519 = vsel %vm1466, %v1456, %v1518
    %v1520 = vsel %vm1468, %v1457, %v1519
    %v1521 = vsel %vm1470, %v1458, %v1520
    %v1522 = vsel %vm1472, %v1459, %v1521
    %vm1531 = vcmask 64512
    %1532 = vst.msk [vmem:[#allocation5] sm:$0xff] %vm1531, %v1473
    %1533 = vst.msk [vmem:[#allocation5 + $0x8] sm:$0xff] %vm1531, %v1480
    %1534 = vst.msk [vmem:[#allocation5 + $0x10] sm:$0xff] %vm1531, %v1487
    %1535 = vst.msk [vmem:[#allocation5 + $0x18] sm:$0xff] %vm1531, %v1494
    %1536 = vst.msk [vmem:[#allocation5 + $0x20] sm:$0xff] %vm1531, %v1501
    %1537 = vst.msk [vmem:[#allocation5 + $0x28] sm:$0xff] %vm1531, %v1508
    %1538 = vst.msk [vmem:[#allocation5 + $0x30] sm:$0xff] %vm1531, %v1515
    %1539 = vst.msk [vmem:[#allocation5 + $0x38] sm:$0xff] %vm1531, %v1522
    // Predicated region
    $region10: #{_maxpool2d_nchw.1} parent=1 // pred_check
      _
    $region11: #{_maxpool2d_nchw.1} parent=1 // pred_check_branch
      %1541 = sbr.rel (0) target = $region13
    $region12: #{_maxpool2d_nchw.1} parent=1 // pred_region
      %1543 = vsyncadd [#allocation4], 0
      %s1544 = sshll.u32 [#allocation5], 4
      %s1545 = int_to_ptr.vmem [resolvable:$true] %s1544
      %s1546 = sshll.u32 %s1, 4
      %s1547 = int_to_ptr.hbm [resolvable:$true] %s1546
      %1552 = dma.vmem_to_hbm [thread:$0]  %s1545, 1024, %s1547, [#allocation4], 128, 128, 8
    $region13: #{_maxpool2d_nchw.1} parent=1 // pred_fallthru
      _
    // Predicated region
    $region14: #{_maxpool2d_nchw.1} parent=1 // pred_check
      _
    $region15: #{_maxpool2d_nchw.1} parent=1 // pred_check_branch
      %1554 = sbr.rel (0) target = $region17
    $region16: #{_maxpool2d_nchw.1} parent=1 // pred_region
      %1556 = dma.done [#allocation4], 1024
    $region17: #{_maxpool2d_nchw.1} parent=1 // pred_fallthru
      _
    %1557 = vsyncpa [#allocation3], 1
    %1558 = vsyncpa [#allocation4], 1

</llo_original>
